<compile_context>
chip_gen: v7x
topology: tpu7x:2x2x1
jax: 0.10.0
libtpu: 0.0.40
codegen_flags: <defaults>
</compile_context>

<pallas_src>
import jax
import jax.numpy as jnp
from jax.experimental import pallas as pl
from jax.experimental.pallas import tpu as pltpu


def _round_up(x, m):
    return ((x + m - 1) // m) * m


def qnet_kernel(x_ref,
                w1_ref, b1_ref,
                w2_ref, b2_ref,
                w3_ref, b3_ref,
                w4_ref, b4_ref,
                o_ref):
    """Fused 4-layer MLP forward for one batch tile.

    x_ref is f32 and cast to bf16 here; weights are resident bf16;
    accumulation is f32; the final store is narrow (action_dim lanes) f32.
    """
    x = x_ref[...].astype(jnp.bfloat16)

    h = jnp.dot(x, w1_ref[...], preferred_element_type=jnp.float32)
    h = jnp.maximum(h + b1_ref[...], 0.0)

    h = jnp.dot(h.astype(jnp.bfloat16), w2_ref[...],
                preferred_element_type=jnp.float32)
    h = jnp.maximum(h + b2_ref[...], 0.0)

    h = jnp.dot(h.astype(jnp.bfloat16), w3_ref[...],
                preferred_element_type=jnp.float32)
    h = jnp.maximum(h + b3_ref[...], 0.0)

    h = jnp.dot(h.astype(jnp.bfloat16), w4_ref[...],
                preferred_element_type=jnp.float32)
    o_ref[...] = (h + b4_ref[...]).astype(o_ref.dtype)


def pack_qnetwork_params(params):
    """One-time prep (call OUTSIDE the per-step forward jit).

    Pads the 64-wide hidden layer to 128 lanes (zero cols/rows: exact no-op)
    and casts weights to bf16. Biases stay f32 (added to the f32 accumulator).
    The output-dim of w4 (action_dim) is NOT padded — the kernel stores a
    narrow output block instead.
    """
    w1, b1, w2, b2, w3, b3, w4, b4 = params
    h3 = w3.shape[1]                               # 64
    h3p = _round_up(h3, 128)                       # 128
    w3 = jnp.pad(w3, ((0, 0), (0, h3p - h3)))
    b3 = jnp.pad(b3, ((0, 0), (0, h3p - h3)))
    w4 = jnp.pad(w4, ((0, h3p - h3), (0, 0)))      # pad K rows only
    bf = lambda a: a.astype(jnp.bfloat16)
    return (bf(w1), b1, bf(w2), b2, bf(w3), b3, bf(w4), b4)


def _pick_tile_b(B):
    """Batch-tile size.

    * tiny batches  (<16)     : one small tile,
    * medium batches (16..2048): exactly two tiles (keeps both v7x
      TensorCores busy under dimension_semantics=("parallel",) with at most
      15 rows of padding),
    * large batches (>2048)   : the largest of {1024,512,256,128} whose
      row-padding waste stays <= 12.5% (few, big grid steps; bounded waste).
    """
    if B < 16:
        return _round_up(max(B, 1), 8)
    if B <= 2048:
        return _round_up(pl.cdiv(B, 2), 8)
    for t in (1024, 512, 256, 128):
        bp = _round_up(B, t)
        if (bp - B) * 8 <= bp:                     # waste <= 12.5%
            return t
    return 128


@jax.jit
def qnetwork_forward(x, packed_params):
    """x: [B, state_dim] f32. packed_params: output of pack_qnetwork_params.
    Returns [B, action_dim] f32 (PyTorch forward semantics, bf16-matmul
    numerics with f32 accumulation)."""
    w1, b1, w2, b2, w3, b3, w4, b4 = packed_params
    B, state_dim = x.shape
    action_dim = w4.shape[1]

    tile_b = _pick_tile_b(B)
    bp = _round_up(B, tile_b)
    if bp != B:
        x = jnp.pad(x, ((0, bp - B), (0, 0)))      # single fused pad, stays f32

    full2d = lambda a: pl.BlockSpec(a.shape, lambda i: (0, 0))  # resident operand

    out = pl.pallas_call(
        qnet_kernel,
        out_shape=jax.ShapeDtypeStruct((bp, action_dim), jnp.float32),
        grid=(bp // tile_b,),
        in_specs=[pl.BlockSpec((tile_b, state_dim), lambda i: (i, 0)),
                  full2d(w1), full2d(b1),
                  full2d(w2), full2d(b2),
                  full2d(w3), full2d(b3),
                  full2d(w4), full2d(b4)],
        out_specs=pl.BlockSpec((tile_b, action_dim), lambda i: (i, 0)),
        compiler_params=pltpu.CompilerParams(
            dimension_semantics=("parallel",)),
    )(x, w1, b1, w2, b2, w3, b3, w4, b4)

    return out[:B] if bp != B else out


def init_qnetwork_params(key, state_dim, action_dim):
    """Deterministic Kaiming-normal (fan_in, relu) weights, zero biases —
    mirrors the PyTorch module's __init__. Weights are [in, out], f32."""
    dims = [state_dim, 256, 128, 64, action_dim]
    params = []
    for i in range(4):
        fan_in, fan_out = dims[i], dims[i + 1]
        key, sub = jax.random.split(key)
        std = (2.0 / fan_in) ** 0.5  # kaiming_normal_, mode='fan_in', relu gain
        w = std * jax.random.normal(sub, (fan_in, fan_out), dtype=jnp.float32)
        b = jnp.zeros((1, fan_out), dtype=jnp.float32)
        params += [w, b]
    return tuple(params)


def qnetwork_ref(x, params, matmul_dtype=jnp.float32):
    """Pure-JAX reference. matmul_dtype=jnp.bfloat16 matches kernel numerics."""
    (w1, b1, w2, b2, w3, b3, w4, b4) = params
    c = lambda a: a.astype(matmul_dtype)
    h = jnp.maximum(
        jnp.dot(c(x), c(w1), preferred_element_type=jnp.float32) + b1, 0.0)
    h = jnp.maximum(
        jnp.dot(c(h), c(w2), preferred_element_type=jnp.float32) + b2, 0.0)
    h = jnp.maximum(
        jnp.dot(c(h), c(w3), preferred_element_type=jnp.float32) + b3, 0.0)
    return jnp.dot(c(h), c(w4), preferred_element_type=jnp.float32) + b4


if __name__ == "__main__":
    key = jax.random.PRNGKey(0)
    state_dim, action_dim = 32, 8

    k_params, k_x1, k_x2 = jax.random.split(key, 3)
    params = init_qnetwork_params(k_params, state_dim, action_dim)
    packed = pack_qnetwork_params(params)   # one-time pad + bf16 cast

    # Small batch (single-tile path).
    batch = 8
    x = jax.random.normal(k_x1, (batch, state_dim), dtype=jnp.float32)
    out = jax.block_until_ready(qnetwork_forward(x, packed))
    assert out.shape == (batch, action_dim)
    ref_bf16 = qnetwork_ref(x, params, matmul_dtype=jnp.bfloat16)
    ref_f32 = qnetwork_ref(x, params, matmul_dtype=jnp.float32)
    assert jnp.allclose(out, ref_bf16, atol=5e-3, rtol=5e-3), "mismatch vs bf16 ref"
    assert jnp.allclose(out, ref_f32, atol=5e-2, rtol=5e-2), "mismatch vs f32 ref"

    # Medium batch: two tiles (both v7x TensorCores), 300 rows padded to 304.
    batch2 = 300
    x2 = jax.random.normal(k_x2, (batch2, state_dim), dtype=jnp.float32)
    out2 = jax.block_until_ready(qnetwork_forward(x2, packed))
    assert out2.shape == (batch2, action_dim)
    ref2 = qnetwork_ref(x2, params, matmul_dtype=jnp.bfloat16)
    assert jnp.allclose(out2, ref2, atol=5e-3, rtol=5e-3), "mismatch vs bf16 ref (B=300)"

    print("KERNEL_OK")
</pallas_src>

<mosaic_0001>
module attributes {stable_mosaic.version = 11 : i64} {
  func.func @qnet_kernel(%arg0: i32, %arg1: memref<8x32xf32, #tpu.memory_space<vmem>>, %arg2: memref<32x256xbf16, #tpu.memory_space<vmem>>, %arg3: memref<1x256xf32, #tpu.memory_space<vmem>>, %arg4: memref<256x128xbf16, #tpu.memory_space<vmem>>, %arg5: memref<1x128xf32, #tpu.memory_space<vmem>>, %arg6: memref<128x128xbf16, #tpu.memory_space<vmem>>, %arg7: memref<1x128xf32, #tpu.memory_space<vmem>>, %arg8: memref<128x8xbf16, #tpu.memory_space<vmem>>, %arg9: memref<1x8xf32, #tpu.memory_space<vmem>>, %arg10: memref<8x8xf32, #tpu.memory_space<vmem>>) attributes {dimension_semantics = [#tpu.dimension_semantics<parallel>], iteration_bounds = array<i64: 1>, scalar_prefetch = 0 : i64, scratch_operands = 0 : i64, tpu.core_type = #tpu.core_type<tc>, window_params = [{transform_indices = @transform_0, window_bounds = array<i64: 8, 32>}, {pipeline_mode = #tpu.pipeline_mode<synchronous>, transform_indices = @transform_1, window_bounds = array<i64: 32, 256>}, {pipeline_mode = #tpu.pipeline_mode<synchronous>, transform_indices = @transform_2, window_bounds = array<i64: 1, 256>}, {pipeline_mode = #tpu.pipeline_mode<synchronous>, transform_indices = @transform_3, window_bounds = array<i64: 256, 128>}, {pipeline_mode = #tpu.pipeline_mode<synchronous>, transform_indices = @transform_4, window_bounds = array<i64: 1, 128>}, {pipeline_mode = #tpu.pipeline_mode<synchronous>, transform_indices = @transform_5, window_bounds = array<i64: 128, 128>}, {pipeline_mode = #tpu.pipeline_mode<synchronous>, transform_indices = @transform_6, window_bounds = array<i64: 1, 128>}, {pipeline_mode = #tpu.pipeline_mode<synchronous>, transform_indices = @transform_7, window_bounds = array<i64: 128, 8>}, {pipeline_mode = #tpu.pipeline_mode<synchronous>, transform_indices = @transform_8, window_bounds = array<i64: 1, 8>}, {transform_indices = @transform_9, window_bounds = array<i64: 8, 8>}]} {
    %c0 = arith.constant 0 : index
    %c0_0 = arith.constant 0 : index
    %0 = vector.load %arg1[%c0, %c0_0] : memref<8x32xf32, #tpu.memory_space<vmem>>, vector<8x32xf32>
    %1 = arith.truncf %0 : vector<8x32xf32> to vector<8x32xbf16>
    %c0_1 = arith.constant 0 : index
    %c0_2 = arith.constant 0 : index
    %2 = vector.load %arg2[%c0_1, %c0_2] : memref<32x256xbf16, #tpu.memory_space<vmem>>, vector<32x256xbf16>
    %cst = arith.constant dense<0.000000e+00> : vector<8x256xf32>
    %3 = tpu.matmul %1, %2, %cst {dimension_numbers = #tpu.dot_dimension_numbers<[1], [0], [0], [1], [0, 0, 1, 1], [], []>} : vector<8x32xbf16>, vector<32x256xbf16>, vector<8x256xf32> -> vector<8x256xf32>
    %c0_3 = arith.constant 0 : index
    %c0_4 = arith.constant 0 : index
    %4 = vector.load %arg3[%c0_3, %c0_4] : memref<1x256xf32, #tpu.memory_space<vmem>>, vector<1x256xf32>
    %5 = vector.broadcast %4 : vector<1x256xf32> to vector<8x256xf32>
    %6 = arith.addf %3, %5 : vector<8x256xf32>
    %cst_5 = arith.constant 0.000000e+00 : f32
    %7 = vector.broadcast %cst_5 : f32 to vector<8x256xf32>
    %8 = arith.maximumf %6, %7 : vector<8x256xf32>
    %9 = arith.truncf %8 : vector<8x256xf32> to vector<8x256xbf16>
    %c0_6 = arith.constant 0 : index
    %c0_7 = arith.constant 0 : index
    %10 = vector.load %arg4[%c0_6, %c0_7] : memref<256x128xbf16, #tpu.memory_space<vmem>>, vector<256x128xbf16>
    %cst_8 = arith.constant dense<0.000000e+00> : vector<8x128xf32>
    %11 = tpu.matmul %9, %10, %cst_8 {dimension_numbers = #tpu.dot_dimension_numbers<[1], [0], [0], [1], [0, 0, 1, 1], [], []>} : vector<8x256xbf16>, vector<256x128xbf16>, vector<8x128xf32> -> vector<8x128xf32>
    %c0_9 = arith.constant 0 : index
    %c0_10 = arith.constant 0 : index
    %12 = vector.load %arg5[%c0_9, %c0_10] : memref<1x128xf32, #tpu.memory_space<vmem>>, vector<1x128xf32>
    %13 = vector.broadcast %12 : vector<1x128xf32> to vector<8x128xf32>
    %14 = arith.addf %11, %13 : vector<8x128xf32>
    %cst_11 = arith.constant 0.000000e+00 : f32
    %15 = vector.broadcast %cst_11 : f32 to vector<8x128xf32>
    %16 = arith.maximumf %14, %15 : vector<8x128xf32>
    %17 = arith.truncf %16 : vector<8x128xf32> to vector<8x128xbf16>
    %c0_12 = arith.constant 0 : index
    %c0_13 = arith.constant 0 : index
    %18 = vector.load %arg6[%c0_12, %c0_13] : memref<128x128xbf16, #tpu.memory_space<vmem>>, vector<128x128xbf16>
    %cst_14 = arith.constant dense<0.000000e+00> : vector<8x128xf32>
    %19 = tpu.matmul %17, %18, %cst_14 {dimension_numbers = #tpu.dot_dimension_numbers<[1], [0], [0], [1], [0, 0, 1, 1], [], []>} : vector<8x128xbf16>, vector<128x128xbf16>, vector<8x128xf32> -> vector<8x128xf32>
    %c0_15 = arith.constant 0 : index
    %c0_16 = arith.constant 0 : index
    %20 = vector.load %arg7[%c0_15, %c0_16] : memref<1x128xf32, #tpu.memory_space<vmem>>, vector<1x128xf32>
    %21 = vector.broadcast %20 : vector<1x128xf32> to vector<8x128xf32>
    %22 = arith.addf %19, %21 : vector<8x128xf32>
    %cst_17 = arith.constant 0.000000e+00 : f32
    %23 = vector.broadcast %cst_17 : f32 to vector<8x128xf32>
    %24 = arith.maximumf %22, %23 : vector<8x128xf32>
    %25 = arith.truncf %24 : vector<8x128xf32> to vector<8x128xbf16>
    %c0_18 = arith.constant 0 : index
    %c0_19 = arith.constant 0 : index
    %26 = vector.load %arg8[%c0_18, %c0_19] : memref<128x8xbf16, #tpu.memory_space<vmem>>, vector<128x8xbf16>
    %cst_20 = arith.constant dense<0.000000e+00> : vector<8x8xf32>
    %27 = tpu.matmul %25, %26, %cst_20 {dimension_numbers = #tpu.dot_dimension_numbers<[1], [0], [0], [1], [0, 0, 1, 1], [], []>} : vector<8x128xbf16>, vector<128x8xbf16>, vector<8x8xf32> -> vector<8x8xf32>
    %c0_21 = arith.constant 0 : index
    %c0_22 = arith.constant 0 : index
    %28 = vector.load %arg9[%c0_21, %c0_22] : memref<1x8xf32, #tpu.memory_space<vmem>>, vector<1x8xf32>
    %29 = vector.broadcast %28 : vector<1x8xf32> to vector<8x8xf32>
    %30 = arith.addf %27, %29 : vector<8x8xf32>
    %c0_23 = arith.constant 0 : index
    %c0_24 = arith.constant 0 : index
    %31 = vector.load %arg10[%c0_23, %c0_24] : memref<8x8xf32, #tpu.memory_space<vmem>>, vector<8x8xf32>
    tpu.vector_store %arg10[%c0_23, %c0_24], %30 {strides = array<i32>} : memref<8x8xf32, #tpu.memory_space<vmem>>, vector<8x8xf32>,
    return
  }
  func.func @transform_0(%arg0: i32) -> (i32, i32) {
    %c0_i32 = arith.constant 0 : i32
    %c0_i32_0 = arith.constant 0 : i32
    return %arg0, %c0_i32 : i32, i32
  }
  func.func @transform_1(%arg0: i32) -> (i32, i32) {
    %c0_i32 = arith.constant 0 : i32
    %c0_i32_0 = arith.constant 0 : i32
    %c0_i32_1 = arith.constant 0 : i32
    return %c0_i32, %c0_i32_0 : i32, i32
  }
  func.func @transform_2(%arg0: i32) -> (i32, i32) {
    %c0_i32 = arith.constant 0 : i32
    %c0_i32_0 = arith.constant 0 : i32
    %c0_i32_1 = arith.constant 0 : i32
    return %c0_i32, %c0_i32_0 : i32, i32
  }
  func.func @transform_3(%arg0: i32) -> (i32, i32) {
    %c0_i32 = arith.constant 0 : i32
    %c0_i32_0 = arith.constant 0 : i32
    %c0_i32_1 = arith.constant 0 : i32
    return %c0_i32, %c0_i32_0 : i32, i32
  }
  func.func @transform_4(%arg0: i32) -> (i32, i32) {
    %c0_i32 = arith.constant 0 : i32
    %c0_i32_0 = arith.constant 0 : i32
    %c0_i32_1 = arith.constant 0 : i32
    return %c0_i32, %c0_i32_0 : i32, i32
  }
  func.func @transform_5(%arg0: i32) -> (i32, i32) {
    %c0_i32 = arith.constant 0 : i32
    %c0_i32_0 = arith.constant 0 : i32
    %c0_i32_1 = arith.constant 0 : i32
    return %c0_i32, %c0_i32_0 : i32, i32
  }
  func.func @transform_6(%arg0: i32) -> (i32, i32) {
    %c0_i32 = arith.constant 0 : i32
    %c0_i32_0 = arith.constant 0 : i32
    %c0_i32_1 = arith.constant 0 : i32
    return %c0_i32, %c0_i32_0 : i32, i32
  }
  func.func @transform_7(%arg0: i32) -> (i32, i32) {
    %c0_i32 = arith.constant 0 : i32
    %c0_i32_0 = arith.constant 0 : i32
    %c0_i32_1 = arith.constant 0 : i32
    return %c0_i32, %c0_i32_0 : i32, i32
  }
  func.func @transform_8(%arg0: i32) -> (i32, i32) {
    %c0_i32 = arith.constant 0 : i32
    %c0_i32_0 = arith.constant 0 : i32
    %c0_i32_1 = arith.constant 0 : i32
    return %c0_i32, %c0_i32_0 : i32, i32
  }
  func.func @transform_9(%arg0: i32) -> (i32, i32) {
    %c0_i32 = arith.constant 0 : i32
    %c0_i32_0 = arith.constant 0 : i32
    return %arg0, %c0_i32 : i32, i32
  }
}

</mosaic_0001>

<llo_original>
// kernel: qnetwork_forward.1
$region0: #{qnetwork_forward.1}
  #allocation0 [shape = 'u32[]', space=smem, size = 0x4, offset = 0x4, fixed_abs, tag = 'smem constant byte address 0x4 - core index']
  #allocation1 [shape = 'u32[144,128]{1,0:T(1,128)}', space=vmem, size = 0x12000, scoped, tag = 'internal scratch']
  %s0 = inlined_call_operand.vmem [shape: f32[8,32], index: 0, kind: input, shape index: {}]
  %s1 = inlined_call_operand.hbm [shape: bf16[32,256], index: 1, kind: input, shape index: {}]
  %s2 = inlined_call_operand.vmem [shape: f32[1,256], index: 2, kind: input, shape index: {}]
  %s3 = inlined_call_operand.hbm [shape: bf16[256,128], index: 3, kind: input, shape index: {}]
  %s4 = inlined_call_operand.vmem [shape: f32[1,128], index: 4, kind: input, shape index: {}]
  %s5 = inlined_call_operand.vmem [shape: bf16[128,128], index: 5, kind: input, shape index: {}]
  %s6 = inlined_call_operand.vmem [shape: f32[1,128], index: 6, kind: input, shape index: {}]
  %s7 = inlined_call_operand.vmem [shape: bf16[128,8], index: 7, kind: input, shape index: {}]
  %s8 = inlined_call_operand.vmem [shape: f32[1,8], index: 8, kind: input, shape index: {}]
  %s9 = inlined_call_operand.hbm [shape: f32[8,8], index: 9, kind: output, shape index: {}]
  %s10 = sld [smem:[#allocation0]]
  $region54: #{qnetwork_forward.1} parent=0
    _
  %s12 = ssub.s32 1, %s10
  %s13 = scalar_select 0, %s12, %s10
  $region1: #{qnetwork_forward.1} parent=0
    #allocation2 [shape = 'u8[16384]{0}', space=vmem, size = 0x4000, scoped, tag = 'input window, operand 1, single buffered']
    #allocation3 [shape = 's32[1]{0}', space=sflag, size = 0x4, scoped, tag = 'scoped memory for qnetwork_forward.1']
    #allocation4 [shape = 's32[1]{0}', space=sflag, size = 0x4, scoped, tag = 'scoped memory for qnetwork_forward.1']
    #allocation5 [shape = 'u8[65536]{0}', space=vmem, size = 0x10000, scoped, tag = 'input window, operand 3, single buffered']
    #allocation6 [shape = 's32[1]{0}', space=sflag, size = 0x4, scoped, tag = 'scoped memory for qnetwork_forward.1']
    #allocation7 [shape = 'u8[4096]{0}', space=vmem, size = 0x1000, scoped, tag = 'output window, operand 0, single buffered']
    %14 = vsyncpa [#allocation3], 0
    %15 = vsyncpa [#allocation6], 0
    %16 = vsyncpa [#allocation4], 0
    // Predicated region
    $region2: #{qnetwork_forward.1} parent=1 // pred_check
      _
    $region3: #{qnetwork_forward.1} parent=1 // pred_check_branch
      %18 = sbr.rel (0) target = $region5
    $region4: #{qnetwork_forward.1} parent=1 // pred_region
      _
    $region5: #{qnetwork_forward.1} parent=1 // pred_fallthru
      _
    // Predicated region
    $region6: #{qnetwork_forward.1} parent=1 // pred_check
      _
    $region7: #{qnetwork_forward.1} parent=1 // pred_check_branch
      %20 = sbr.rel (0) target = $region9
    $region8: #{qnetwork_forward.1} parent=1 // pred_region
      %s22 = ssub.s32 512, 512
      %23 = vsyncadd [#allocation3], %s22
      %s24 = sshll.u32 [#allocation2], 4
      %s25 = int_to_ptr.vmem [resolvable:$true] %s24
      %30 = dma.hbm_to_vmem [thread:$0]  %s1, 512, %s25, [#allocation3], 128, 128, 8
    $region9: #{qnetwork_forward.1} parent=1 // pred_fallthru
      _
    // Predicated region
    $region10: #{qnetwork_forward.1} parent=1 // pred_check
      _
    $region11: #{qnetwork_forward.1} parent=1 // pred_check_branch
      %32 = sbr.rel (0) target = $region13
    $region12: #{qnetwork_forward.1} parent=1 // pred_region
      _
    $region13: #{qnetwork_forward.1} parent=1 // pred_fallthru
      _
    // Predicated region
    $region14: #{qnetwork_forward.1} parent=1 // pred_check
      _
    $region15: #{qnetwork_forward.1} parent=1 // pred_check_branch
      %34 = sbr.rel (0) target = $region17
    $region16: #{qnetwork_forward.1} parent=1 // pred_region
      %s36 = ssub.s32 2048, 2048
      %37 = vsyncadd [#allocation6], %s36
      %s38 = sshll.u32 [#allocation5], 4
      %s39 = int_to_ptr.vmem [resolvable:$true] %s38
      %44 = dma.hbm_to_vmem [thread:$0]  %s3, 2048, %s39, [#allocation6], 64, 64, 4
    $region17: #{qnetwork_forward.1} parent=1 // pred_fallthru
      _
    // Predicated region
    $region18: #{qnetwork_forward.1} parent=1 // pred_check
      _
    $region19: #{qnetwork_forward.1} parent=1 // pred_check_branch
      %46 = sbr.rel (0) target = $region21
    $region20: #{qnetwork_forward.1} parent=1 // pred_region
      _
    $region21: #{qnetwork_forward.1} parent=1 // pred_fallthru
      _
    // Predicated region
    $region22: #{qnetwork_forward.1} parent=1 // pred_check
      _
    $region23: #{qnetwork_forward.1} parent=1 // pred_check_branch
      %48 = sbr.rel (0) target = $region25
    $region24: #{qnetwork_forward.1} parent=1 // pred_region
      _
    $region25: #{qnetwork_forward.1} parent=1 // pred_fallthru
      _
    // Predicated region
    $region26: #{qnetwork_forward.1} parent=1 // pred_check
      _
    $region27: #{qnetwork_forward.1} parent=1 // pred_check_branch
      %50 = sbr.rel (0) target = $region29
    $region28: #{qnetwork_forward.1} parent=1 // pred_region
      _
    $region29: #{qnetwork_forward.1} parent=1 // pred_fallthru
      _
    // Predicated region
    $region30: #{qnetwork_forward.1} parent=1 // pred_check
      _
    $region31: #{qnetwork_forward.1} parent=1 // pred_check_branch
      %52 = sbr.rel (0) target = $region33
    $region32: #{qnetwork_forward.1} parent=1 // pred_region
      _
    $region33: #{qnetwork_forward.1} parent=1 // pred_fallthru
      _
    // Predicated region
    $region34: #{qnetwork_forward.1} parent=1 // pred_check
      _
    $region35: #{qnetwork_forward.1} parent=1 // pred_check_branch
      %54 = sbr.rel (0) target = $region37
    $region36: #{qnetwork_forward.1} parent=1 // pred_region
      _
    $region37: #{qnetwork_forward.1} parent=1 // pred_fallthru
      _
    // Predicated region
    $region38: #{qnetwork_forward.1} parent=1 // pred_check
      _
    $region39: #{qnetwork_forward.1} parent=1 // pred_check_branch
      %56 = sbr.rel (0) target = $region41
    $region40: #{qnetwork_forward.1} parent=1 // pred_region
      %57 = dma.done [#allocation3], 512
    $region41: #{qnetwork_forward.1} parent=1 // pred_fallthru
      _
    // Predicated region
    $region42: #{qnetwork_forward.1} parent=1 // pred_check
      _
    $region43: #{qnetwork_forward.1} parent=1 // pred_check_branch
      %59 = sbr.rel (0) target = $region45
    $region44: #{qnetwork_forward.1} parent=1 // pred_region
      %60 = dma.done [#allocation6], 2048
    $region45: #{qnetwork_forward.1} parent=1 // pred_fallthru
      _
    %v62 = vld [vmem:[%s0] sm:$0xff]
    %v63 = vpack.c.bf16 %v62, %v62
    %v64 = vld [vmem:[#allocation2] sm:$0xff]
    %v65 = vld [vmem:[#allocation2 + $0x8] sm:$0xff]
    %v66 = vld [vmem:[#allocation2 + $0x10] sm:$0xff]
    %v67 = vld [vmem:[#allocation2 + $0x18] sm:$0xff]
    %v68 = vld [vmem:[%s2] sm:$0x3]
    %v70 = vlaneseq
    %v71 = vshrl.u32 %v70, 7
    %v72 = vsub.s32 0, %v71
    %v73 = vrot.slane %v68, %v72
    %v74 = vlaneseq
    %v75 = vshrl.u32 %v74, 7
    %v76 = vsub.s32 1, %v75
    %v77 = vrot.slane %v68, %v76
    %v84 = vunpack.c.l.b16 %v64
    %v85 = vunpack.c.h.b16 %v64
    %v86 = vunpack.c.l.b16 %v65
    %v87 = vunpack.c.h.b16 %v65
    %v88 = vunpack.c.l.b16 %v66
    %v89 = vunpack.c.h.b16 %v66
    %v90 = vunpack.c.l.b16 %v67
    %v91 = vunpack.c.h.b16 %v67
    %v92 = vpack.c.b16 %v86, %v84
    %v93 = vpack.c.b16 %v87, %v85
    %v94 = vpack.c.b16 %v90, %v88
    %v95 = vpack.c.b16 %v91, %v89
    %vm100 = vcmask 261120
    %v102 = vsel %vm100, %v63, 0
    %104 = vmatprep.subr.bf16.mxu0 %v93
    %105 = vmatpush1.bf16.msra.mxu0 %v92
    %106 = vmatprep.subr.bf16.mxu0 %v95
    %107 = vmatpush1.bf16.msra.mxu0 %v94
    %108 = vmatprep.subr.bf16.mxu0 0
    %109 = vmatpush1.bf16.msra.mxu0 0
    %110 = vmatprep.subr.bf16.mxu0 0
    %111 = vmatpush1.bf16.msra.mxu0 0
    %112 = vmatprep.subr.bf16.mxu0 0
    %113 = vmatpush1.bf16.msra.mxu0 0
    %114 = vmatprep.subr.bf16.mxu0 0
    %115 = vmatpush1.bf16.msra.mxu0 0
    %116 = vmatprep.subr.bf16.mxu0 0
    %117 = vmatpush1.bf16.msra.mxu0 0
    %118 = vmatprep.subr.bf16.mxu0 0
    %119 = vmatpush1.bf16.msra.mxu0 0
    %120 = vmatprep.subr.bf16.mxu0 0
    %121 = vmatpush1.bf16.msra.mxu0 0
    %122 = vmatprep.subr.bf16.mxu0 0
    %123 = vmatpush1.bf16.msra.mxu0 0
    %124 = vmatprep.subr.bf16.mxu0 0
    %125 = vmatpush1.bf16.msra.mxu0 0
    %126 = vmatprep.subr.bf16.mxu0 0
    %127 = vmatpush1.bf16.msra.mxu0 0
    %128 = vmatprep.subr.bf16.mxu0 0
    %129 = vmatpush1.bf16.msra.mxu0 0
    %130 = vmatprep.subr.bf16.mxu0 0
    %131 = vmatpush1.bf16.msra.mxu0 0
    %132 = vmatprep.subr.bf16.mxu0 0
    %133 = vmatpush1.bf16.msra.mxu0 0
    %134 = vmatprep.subr.bf16.mxu0 0
    %135 = vmatpush1.bf16.msra.mxu0 0
    %136 = vmatprep.mubr.bf16.mxu0 0
    %137 = vmatmul.mubr.bf16.gmra.mrb[0].mxu0 %v102
    %v138 = vpop.f32.mrb[0].mxu0
    %v139 = vadd.f32 %v73, %v138
    %v140 = vpop.f32.mrb[0].mxu0
    %v141 = vadd.f32 %v77, %v140
    %v142 = vpop.f32.mrb[0].mxu0
    %v143 = vpop.f32.mrb[0].mxu0
    %144 = vdwg.mxu0
    %v145 = vmax.f32 %v139, 0.0
    %v146 = vmax.f32 %v141, 0.0
    %v147 = vpack.c.bf16 %v145, %v145
    %v148 = vpack.c.bf16 %v146, %v146
    %v149 = vld [vmem:[#allocation5] sm:$0xf]
    %v150 = vld [vmem:[#allocation5 + $0x4] sm:$0xf]
    %v151 = vld [vmem:[#allocation5 + $0x8] sm:$0xf]
    %v152 = vld [vmem:[#allocation5 + $0xc] sm:$0xf]
    %v153 = vld [vmem:[#allocation5 + $0x10] sm:$0xf]
    %v154 = vld [vmem:[#allocation5 + $0x14] sm:$0xf]
    %v155 = vld [vmem:[#allocation5 + $0x18] sm:$0xf]
    %v156 = vld [vmem:[#allocation5 + $0x1c] sm:$0xf]
    %v157 = vld [vmem:[#allocation5 + $0x20] sm:$0xf]
    %v158 = vld [vmem:[#allocation5 + $0x24] sm:$0xf]
    %v159 = vld [vmem:[#allocation5 + $0x28] sm:$0xf]
    %v160 = vld [vmem:[#allocation5 + $0x2c] sm:$0xf]
    %v161 = vld [vmem:[#allocation5 + $0x30] sm:$0xf]
    %v162 = vld [vmem:[#allocation5 + $0x34] sm:$0xf]
    %v163 = vld [vmem:[#allocation5 + $0x38] sm:$0xf]
    %v164 = vld [vmem:[#allocation5 + $0x3c] sm:$0xf]
    %v165 = vld [vmem:[#allocation5 + $0x40] sm:$0xf]
    %v166 = vld [vmem:[#allocation5 + $0x44] sm:$0xf]
    %v167 = vld [vmem:[#allocation5 + $0x48] sm:$0xf]
    %v168 = vld [vmem:[#allocation5 + $0x4c] sm:$0xf]
    %v169 = vld [vmem:[#allocation5 + $0x50] sm:$0xf]
    %v170 = vld [vmem:[#allocation5 + $0x54] sm:$0xf]
    %v171 = vld [vmem:[#allocation5 + $0x58] sm:$0xf]
    %v172 = vld [vmem:[#allocation5 + $0x5c] sm:$0xf]
    %v173 = vld [vmem:[#allocation5 + $0x60] sm:$0xf]
    %v174 = vld [vmem:[#allocation5 + $0x64] sm:$0xf]
    %v175 = vld [vmem:[#allocation5 + $0x68] sm:$0xf]
    %v176 = vld [vmem:[#allocation5 + $0x6c] sm:$0xf]
    %v177 = vld [vmem:[#allocation5 + $0x70] sm:$0xf]
    %v178 = vld [vmem:[#allocation5 + $0x74] sm:$0xf]
    %v179 = vld [vmem:[#allocation5 + $0x78] sm:$0xf]
    %v180 = vld [vmem:[#allocation5 + $0x7c] sm:$0xf]
    %v181 = vld [vmem:[%s4] sm:$0x1]
    %v183 = vlaneseq
    %v184 = vshrl.u32 %v183, 7
    %v185 = vsub.s32 0, %v184
    %v186 = vrot.slane %v181, %v185
    %v220 = vunpack.c.l.b16 %v149
    %v221 = vunpack.c.l.b16 %v150
    %v222 = vunpack.c.l.b16 %v151
    %v223 = vunpack.c.l.b16 %v152
    %v224 = vunpack.c.l.b16 %v153
    %v225 = vunpack.c.l.b16 %v154
    %v226 = vunpack.c.l.b16 %v155
    %v227 = vunpack.c.l.b16 %v156
    %v228 = vunpack.c.l.b16 %v157
    %v229 = vunpack.c.l.b16 %v158
    %v230 = vunpack.c.l.b16 %v159
    %v231 = vunpack.c.l.b16 %v160
    %v232 = vunpack.c.l.b16 %v161
    %v233 = vunpack.c.l.b16 %v162
    %v234 = vunpack.c.l.b16 %v163
    %v235 = vunpack.c.l.b16 %v164
    %v236 = vunpack.c.l.b16 %v165
    %v237 = vunpack.c.l.b16 %v166
    %v238 = vunpack.c.l.b16 %v167
    %v239 = vunpack.c.l.b16 %v168
    %v240 = vunpack.c.l.b16 %v169
    %v241 = vunpack.c.l.b16 %v170
    %v242 = vunpack.c.l.b16 %v171
    %v243 = vunpack.c.l.b16 %v172
    %v244 = vunpack.c.l.b16 %v173
    %v245 = vunpack.c.l.b16 %v174
    %v246 = vunpack.c.l.b16 %v175
    %v247 = vunpack.c.l.b16 %v176
    %v248 = vunpack.c.l.b16 %v177
    %v249 = vunpack.c.l.b16 %v178
    %v250 = vunpack.c.l.b16 %v179
    %v251 = vunpack.c.l.b16 %v180
    %v252 = vpack.c.b16 %v221, %v220
    %v253 = vpack.c.b16 %v223, %v222
    %v254 = vpack.c.b16 %v225, %v224
    %v255 = vpack.c.b16 %v227, %v226
    %v256 = vpack.c.b16 %v229, %v228
    %v257 = vpack.c.b16 %v231, %v230
    %v258 = vpack.c.b16 %v233, %v232
    %v259 = vpack.c.b16 %v235, %v234
    %v260 = vpack.c.b16 %v237, %v236
    %v261 = vpack.c.b16 %v239, %v238
    %v262 = vpack.c.b16 %v241, %v240
    %v263 = vpack.c.b16 %v243, %v242
    %v264 = vpack.c.b16 %v245, %v244
    %v265 = vpack.c.b16 %v247, %v246
    %v266 = vpack.c.b16 %v249, %v248
    %v267 = vpack.c.b16 %v251, %v250
    %284 = vmatprep.subr.bf16.mxu0 0
    %285 = vmatpush1.bf16.msra.mxu0 %v252
    %286 = vmatprep.subr.bf16.mxu0 0
    %287 = vmatpush1.bf16.msra.mxu0 %v253
    %288 = vmatprep.subr.bf16.mxu0 0
    %289 = vmatpush1.bf16.msra.mxu0 %v254
    %290 = vmatprep.subr.bf16.mxu0 0
    %291 = vmatpush1.bf16.msra.mxu0 %v255
    %292 = vmatprep.subr.bf16.mxu0 0
    %293 = vmatpush1.bf16.msra.mxu0 %v256
    %294 = vmatprep.subr.bf16.mxu0 0
    %295 = vmatpush1.bf16.msra.mxu0 %v257
    %296 = vmatprep.subr.bf16.mxu0 0
    %297 = vmatpush1.bf16.msra.mxu0 %v258
    %298 = vmatprep.subr.bf16.mxu0 0
    %299 = vmatpush1.bf16.msra.mxu0 %v259
    %300 = vmatprep.subr.bf16.mxu0 0
    %301 = vmatpush1.bf16.msra.mxu0 %v260
    %302 = vmatprep.subr.bf16.mxu0 0
    %303 = vmatpush1.bf16.msra.mxu0 %v261
    %304 = vmatprep.subr.bf16.mxu0 0
    %305 = vmatpush1.bf16.msra.mxu0 %v262
    %306 = vmatprep.subr.bf16.mxu0 0
    %307 = vmatpush1.bf16.msra.mxu0 %v263
    %308 = vmatprep.subr.bf16.mxu0 0
    %309 = vmatpush1.bf16.msra.mxu0 %v264
    %310 = vmatprep.subr.bf16.mxu0 0
    %311 = vmatpush1.bf16.msra.mxu0 %v265
    %312 = vmatprep.subr.bf16.mxu0 0
    %313 = vmatpush1.bf16.msra.mxu0 %v266
    %314 = vmatprep.subr.bf16.mxu0 0
    %315 = vmatpush1.bf16.msra.mxu0 %v267
    %316 = vmatprep.mubr.bf16.mxu0 %v148
    %317 = vmatmul.mubr.bf16.gmra.mrb[0].mxu0 %v147
    %v318 = vpop.f32.mrb[0].mxu0
    %v319 = vadd.f32 %v186, %v318
    %v320 = vpop.f32.mrb[0].mxu0
    %v321 = vpop.f32.mrb[0].mxu0
    %v322 = vpop.f32.mrb[0].mxu0
    %323 = vdwg.mxu0
    %v324 = vmax.f32 %v319, 0.0
    %v325 = vpack.c.bf16 %v324, %v324
    %v326 = vld [vmem:[%s5] sm:$0xf]
    %v327 = vld [vmem:[%s5 + $0x4] sm:$0xf]
    %v328 = vld [vmem:[%s5 + $0x8] sm:$0xf]
    %v329 = vld [vmem:[%s5 + $0xc] sm:$0xf]
    %v330 = vld [vmem:[%s5 + $0x10] sm:$0xf]
    %v331 = vld [vmem:[%s5 + $0x14] sm:$0xf]
    %v332 = vld [vmem:[%s5 + $0x18] sm:$0xf]
    %v333 = vld [vmem:[%s5 + $0x1c] sm:$0xf]
    %v334 = vld [vmem:[%s5 + $0x20] sm:$0xf]
    %v335 = vld [vmem:[%s5 + $0x24] sm:$0xf]
    %v336 = vld [vmem:[%s5 + $0x28] sm:$0xf]
    %v337 = vld [vmem:[%s5 + $0x2c] sm:$0xf]
    %v338 = vld [vmem:[%s5 + $0x30] sm:$0xf]
    %v339 = vld [vmem:[%s5 + $0x34] sm:$0xf]
    %v340 = vld [vmem:[%s5 + $0x38] sm:$0xf]
    %v341 = vld [vmem:[%s5 + $0x3c] sm:$0xf]
    %v342 = vld [vmem:[%s6] sm:$0x1]
    %v344 = vlaneseq
    %v345 = vshrl.u32 %v344, 7
    %v346 = vsub.s32 0, %v345
    %v347 = vrot.slane %v342, %v346
    %v365 = vunpack.c.l.b16 %v326
    %v366 = vunpack.c.l.b16 %v327
    %v367 = vunpack.c.l.b16 %v328
    %v368 = vunpack.c.l.b16 %v329
    %v369 = vunpack.c.l.b16 %v330
    %v370 = vunpack.c.l.b16 %v331
    %v371 = vunpack.c.l.b16 %v332
    %v372 = vunpack.c.l.b16 %v333
    %v373 = vunpack.c.l.b16 %v334
    %v374 = vunpack.c.l.b16 %v335
    %v375 = vunpack.c.l.b16 %v336
    %v376 = vunpack.c.l.b16 %v337
    %v377 = vunpack.c.l.b16 %v338
    %v378 = vunpack.c.l.b16 %v339
    %v379 = vunpack.c.l.b16 %v340
    %v380 = vunpack.c.l.b16 %v341
    %v381 = vpack.c.b16 %v366, %v365
    %v382 = vpack.c.b16 %v368, %v367
    %v383 = vpack.c.b16 %v370, %v369
    %v384 = vpack.c.b16 %v372, %v371
    %v385 = vpack.c.b16 %v374, %v373
    %v386 = vpack.c.b16 %v376, %v375
    %v387 = vpack.c.b16 %v378, %v377
    %v388 = vpack.c.b16 %v380, %v379
    %397 = vmatprep.subr.bf16.mxu0 0
    %398 = vmatpush1.bf16.msra.mxu0 %v381
    %399 = vmatprep.subr.bf16.mxu0 0
    %400 = vmatpush1.bf16.msra.mxu0 %v382
    %401 = vmatprep.subr.bf16.mxu0 0
    %402 = vmatpush1.bf16.msra.mxu0 %v383
    %403 = vmatprep.subr.bf16.mxu0 0
    %404 = vmatpush1.bf16.msra.mxu0 %v384
    %405 = vmatprep.subr.bf16.mxu0 0
    %406 = vmatpush1.bf16.msra.mxu0 %v385
    %407 = vmatprep.subr.bf16.mxu0 0
    %408 = vmatpush1.bf16.msra.mxu0 %v386
    %409 = vmatprep.subr.bf16.mxu0 0
    %410 = vmatpush1.bf16.msra.mxu0 %v387
    %411 = vmatprep.subr.bf16.mxu0 0
    %412 = vmatpush1.bf16.msra.mxu0 %v388
    %413 = vmatprep.subr.bf16.mxu0 0
    %414 = vmatpush1.bf16.msra.mxu0 0
    %415 = vmatprep.subr.bf16.mxu0 0
    %416 = vmatpush1.bf16.msra.mxu0 0
    %417 = vmatprep.subr.bf16.mxu0 0
    %418 = vmatpush1.bf16.msra.mxu0 0
    %419 = vmatprep.subr.bf16.mxu0 0
    %420 = vmatpush1.bf16.msra.mxu0 0
    %421 = vmatprep.subr.bf16.mxu0 0
    %422 = vmatpush1.bf16.msra.mxu0 0
    %423 = vmatprep.subr.bf16.mxu0 0
    %424 = vmatpush1.bf16.msra.mxu0 0
    %425 = vmatprep.subr.bf16.mxu0 0
    %426 = vmatpush1.bf16.msra.mxu0 0
    %427 = vmatprep.subr.bf16.mxu0 0
    %428 = vmatpush1.bf16.msra.mxu0 0
    %429 = vmatprep.mubr.bf16.mxu0 0
    %430 = vmatmul.mubr.bf16.gmra.mrb[0].mxu0 %v325
    %v431 = vpop.f32.mrb[0].mxu0
    %v432 = vadd.f32 %v347, %v431
    %v433 = vpop.f32.mrb[0].mxu0
    %v434 = vpop.f32.mrb[0].mxu0
    %v435 = vpop.f32.mrb[0].mxu0
    %436 = vdwg.mxu0
    %v437 = vmax.f32 %v432, 0.0
    %v438 = vpack.c.bf16 %v437, %v437
    %v439 = vld [vmem:[%s7] sm:$0xf]
    %v440 = vld [vmem:[%s7 + $0x4] sm:$0xf]
    %v441 = vld [vmem:[%s7 + $0x8] sm:$0xf]
    %v442 = vld [vmem:[%s7 + $0xc] sm:$0xf]
    %v443 = vld [vmem:[%s7 + $0x10] sm:$0xf]
    %v444 = vld [vmem:[%s7 + $0x14] sm:$0xf]
    %v445 = vld [vmem:[%s7 + $0x18] sm:$0xf]
    %v446 = vld [vmem:[%s7 + $0x1c] sm:$0xf]
    %v447 = vld [vmem:[%s7 + $0x20] sm:$0xf]
    %v448 = vld [vmem:[%s7 + $0x24] sm:$0xf]
    %v449 = vld [vmem:[%s7 + $0x28] sm:$0xf]
    %v450 = vld [vmem:[%s7 + $0x2c] sm:$0xf]
    %v451 = vld [vmem:[%s7 + $0x30] sm:$0xf]
    %v452 = vld [vmem:[%s7 + $0x34] sm:$0xf]
    %v453 = vld [vmem:[%s7 + $0x38] sm:$0xf]
    %v454 = vld [vmem:[%s7 + $0x3c] sm:$0xf]
    %v455 = vld [vmem:[%s8] sm:$0x1]
    %v457 = vlaneseq
    %v458 = vshrl.u32 %v457, 7
    %v459 = vsub.s32 0, %v458
    %v460 = vrot.slane %v455, %v459
    %v478 = vunpack.c.l.b16 %v439
    %v479 = vunpack.c.l.b16 %v440
    %v480 = vunpack.c.l.b16 %v441
    %v481 = vunpack.c.l.b16 %v442
    %v482 = vunpack.c.l.b16 %v443
    %v483 = vunpack.c.l.b16 %v444
    %v484 = vunpack.c.l.b16 %v445
    %v485 = vunpack.c.l.b16 %v446
    %v486 = vunpack.c.l.b16 %v447
    %v487 = vunpack.c.l.b16 %v448
    %v488 = vunpack.c.l.b16 %v449
    %v489 = vunpack.c.l.b16 %v450
    %v490 = vunpack.c.l.b16 %v451
    %v491 = vunpack.c.l.b16 %v452
    %v492 = vunpack.c.l.b16 %v453
    %v493 = vunpack.c.l.b16 %v454
    %v494 = vpack.c.b16 %v479, %v478
    %v495 = vpack.c.b16 %v481, %v480
    %v496 = vpack.c.b16 %v483, %v482
    %v497 = vpack.c.b16 %v485, %v484
    %v498 = vpack.c.b16 %v487, %v486
    %v499 = vpack.c.b16 %v489, %v488
    %v500 = vpack.c.b16 %v491, %v490
    %v501 = vpack.c.b16 %v493, %v492
    %510 = vmatprep.subr.bf16.mxu0 0
    %511 = vmatpush1.bf16.msra.mxu0 %v494
    %512 = vmatprep.subr.bf16.mxu0 0
    %513 = vmatpush1.bf16.msra.mxu0 %v495
    %514 = vmatprep.subr.bf16.mxu0 0
    %515 = vmatpush1.bf16.msra.mxu0 %v496
    %516 = vmatprep.subr.bf16.mxu0 0
    %517 = vmatpush1.bf16.msra.mxu0 %v497
    %518 = vmatprep.subr.bf16.mxu0 0
    %519 = vmatpush1.bf16.msra.mxu0 %v498
    %520 = vmatprep.subr.bf16.mxu0 0
    %521 = vmatpush1.bf16.msra.mxu0 %v499
    %522 = vmatprep.subr.bf16.mxu0 0
    %523 = vmatpush1.bf16.msra.mxu0 %v500
    %524 = vmatprep.subr.bf16.mxu0 0
    %525 = vmatpush1.bf16.msra.mxu0 %v501
    %526 = vmatprep.subr.bf16.mxu0 0
    %527 = vmatpush1.bf16.msra.mxu0 0
    %528 = vmatprep.subr.bf16.mxu0 0
    %529 = vmatpush1.bf16.msra.mxu0 0
    %530 = vmatprep.subr.bf16.mxu0 0
    %531 = vmatpush1.bf16.msra.mxu0 0
    %532 = vmatprep.subr.bf16.mxu0 0
    %533 = vmatpush1.bf16.msra.mxu0 0
    %534 = vmatprep.subr.bf16.mxu0 0
    %535 = vmatpush1.bf16.msra.mxu0 0
    %536 = vmatprep.subr.bf16.mxu0 0
    %537 = vmatpush1.bf16.msra.mxu0 0
    %538 = vmatprep.subr.bf16.mxu0 0
    %539 = vmatpush1.bf16.msra.mxu0 0
    %540 = vmatprep.subr.bf16.mxu0 0
    %541 = vmatpush1.bf16.msra.mxu0 0
    %542 = vmatprep.mubr.bf16.mxu0 0
    %543 = vmatmul.mubr.bf16.gmra.mrb[0].mxu0 %v438
    %v544 = vpop.f32.mrb[0].mxu0
    %v545 = vadd.f32 %v460, %v544
    %v546 = vpop.f32.mrb[0].mxu0
    %v547 = vpop.f32.mrb[0].mxu0
    %v548 = vpop.f32.mrb[0].mxu0
    %549 = vdwg.mxu0
    %vm550 = vcmask 64512
    %551 = vst.msk [vmem:[#allocation7] sm:$0xff] %vm550, %v545
    // Predicated region
    $region46: #{qnetwork_forward.1} parent=1 // pred_check
      _
    $region47: #{qnetwork_forward.1} parent=1 // pred_check_branch
      %553 = sbr.rel (0) target = $region49
    $region48: #{qnetwork_forward.1} parent=1 // pred_region
      %s555 = ssub.s32 128, 128
      %556 = vsyncadd [#allocation4], %s555
      %s558 = sshll.u32 [#allocation7], 4
      %s559 = int_to_ptr.vmem [resolvable:$true] %s558
      %561 = dma.vmem_to_hbm [thread:$0]  %s559, 128, %s9, [#allocation4]
    $region49: #{qnetwork_forward.1} parent=1 // pred_fallthru
      _
    // Predicated region
    $region50: #{qnetwork_forward.1} parent=1 // pred_check
      _
    $region51: #{qnetwork_forward.1} parent=1 // pred_check_branch
      %563 = sbr.rel (0) target = $region53
    $region52: #{qnetwork_forward.1} parent=1 // pred_region
      %564 = dma.done [#allocation4], 128
    $region53: #{qnetwork_forward.1} parent=1 // pred_fallthru
      _
    %565 = vsyncpa [#allocation3], 1
    %566 = vsyncpa [#allocation6], 1
    %567 = vsyncpa [#allocation4], 1

</llo_original>
